<compile_context>
chip_gen: v7x
topology: tpu7x:2x2x1
jax: 0.10.0
libtpu: 0.0.40
codegen_flags: <defaults>
</compile_context>

<pallas_src>
import jax
import jax.numpy as jnp
from jax import lax
from jax.experimental import pallas as pl

# ----------------------------- config -------------------------------------
B = 2            # batch of graphs
N = 8            # nodes per graph
F_IN = 8         # input node-feature size
HIDDEN = 32      # hidden_size
LATENT = 16      # latent_size
GNN_ITER = 3     # gnn_iter
# mlp_arch = (HIDDEN,): message MLP is 2*HIDDEN -> HIDDEN -> HIDDEN (two ReLU layers)

BN = B * N           # stacked node rows
OUT_ROWS = 8         # sublane-padded output rows (>= B, multiple of 8)
OUT_LANES = 128      # lane-dense output width (>= LATENT)

# parameter-slab layout: every block starts on a multiple-of-8 row, lane 0.
SLAB_LANES = 128
_R_WEMB = 0     # (F_IN, HIDDEN)        rows   0:8
_R_BEMB = 8     # (1, HIDDEN)           row    8
_R_W1 = 16      # (2*HIDDEN, HIDDEN)    rows  16:80   [W1h ; W1m] stacked
_R_B1 = 80      # (1, HIDDEN)           row   80
_R_W2 = 88      # (HIDDEN, HIDDEN)      rows  88:120
_R_B2 = 120     # (1, HIDDEN)           row  120
_R_WR1 = 128    # (HIDDEN, HIDDEN)      rows 128:160
_R_BR1 = 160    # (1, HIDDEN)           row  160
_R_WR2 = 168    # (HIDDEN, 128-padded)  rows 168:200  (lanes >= LATENT are 0)
_R_BR2 = 200    # (1, 128-padded)       row  200
SLAB_ROWS = 208


# ----------------------------- kernel -------------------------------------
def graph_encoder_kernel(x_ref, adj_ref, pool_ref, p_ref, out_ref):
    # x_ref:    (BN, F_IN)      stacked node features
    # adj_ref:  (BN, BN)        block-diagonal adjacency
    # pool_ref: (OUT_ROWS, BN)  sum-pool matrix (row b sums graph b's nodes)
    # p_ref:    (SLAB_ROWS, SLAB_LANES) packed parameters
    # out_ref:  (OUT_ROWS, OUT_LANES)   lane-dense padded output
    x = x_ref[...]
    adj = adj_ref[...]
    pool = pool_ref[...]

    # static slices of the parameter slab (zero-cost views, single DMA'd slab)
    w_emb = p_ref[_R_WEMB:_R_WEMB + F_IN, :HIDDEN]        # (F_IN, H)
    b_emb = p_ref[_R_BEMB:_R_BEMB + 1, :HIDDEN]           # (1, H)
    w1 = p_ref[_R_W1:_R_W1 + 2 * HIDDEN, :HIDDEN]         # (2H, H) fused [W1h; W1m]
    b1 = p_ref[_R_B1:_R_B1 + 1, :HIDDEN]                  # (1, H)
    w2 = p_ref[_R_W2:_R_W2 + HIDDEN, :HIDDEN]             # (H, H)
    b2 = p_ref[_R_B2:_R_B2 + 1, :HIDDEN]                  # (1, H)
    wr1 = p_ref[_R_WR1:_R_WR1 + HIDDEN, :HIDDEN]          # (H, H)
    br1 = p_ref[_R_BR1:_R_BR1 + 1, :HIDDEN]               # (1, H)
    wr2 = p_ref[_R_WR2:_R_WR2 + HIDDEN, :]                # (H, 128) zero-padded lanes
    br2 = p_ref[_R_BR2:_R_BR2 + 1, :]                     # (1, 128) zero-padded lanes

    # hoist bias broadcasts out of the unrolled loop (no CSE of broadcasts)
    b1b = jnp.broadcast_to(b1, (BN, HIDDEN))
    b2b = jnp.broadcast_to(b2, (BN, HIDDEN))

    # node embedding: H = relu(X @ W_emb + b_emb), all graphs at once
    h0 = jnp.maximum(
        jnp.dot(x, w_emb, preferred_element_type=jnp.float32)
        + jnp.broadcast_to(b_emb, (BN, HIDDEN)),
        0.0,
    )                                                      # (BN, H)

    # synchronous message passing, gnn_iter rounds, whole batch per matmul
    def body(_, h):
        m = jnp.dot(adj, h, preferred_element_type=jnp.float32)   # (BN, H)
        hm = jnp.concatenate([h, m], axis=1)                       # (BN, 2H)
        z = jnp.maximum(
            jnp.dot(hm, w1, preferred_element_type=jnp.float32) + b1b, 0.0
        )
        return jnp.maximum(
            jnp.dot(z, w2, preferred_element_type=jnp.float32) + b2b, 0.0
        )

    h = lax.fori_loop(0, GNN_ITER, body, h0, unroll=True)          # (BN, H)

    # GraphReadout: per-graph sum-pool via pooling matmul, then batched MLP
    g = jnp.dot(pool, h, preferred_element_type=jnp.float32)       # (OUT_ROWS, H)
    r = jnp.maximum(
        jnp.dot(g, wr1, preferred_element_type=jnp.float32)
        + jnp.broadcast_to(br1, (OUT_ROWS, HIDDEN)),
        0.0,
    )
    # lane-dense padded store; lanes >= LATENT / rows >= B are padding
    out_ref[...] = (
        jnp.dot(r, wr2, preferred_element_type=jnp.float32)
        + jnp.broadcast_to(br2, (OUT_ROWS, OUT_LANES))
    )


# ----------------------------- wrapper -------------------------------------
def pack_params(params):
    """Pack the 11 weight/bias arrays into one (208, 128) f32 slab."""
    (w_emb, b_emb, w1h, w1m, b1, w2, b2, wr1, br1, wr2, br2) = params
    slab = jnp.zeros((SLAB_ROWS, SLAB_LANES), jnp.float32)
    slab = slab.at[_R_WEMB:_R_WEMB + F_IN, :HIDDEN].set(w_emb)
    slab = slab.at[_R_BEMB, :HIDDEN].set(b_emb.reshape(-1))
    slab = slab.at[_R_W1:_R_W1 + 2 * HIDDEN, :HIDDEN].set(
        jnp.concatenate([w1h, w1m], axis=0)
    )
    slab = slab.at[_R_B1, :HIDDEN].set(b1.reshape(-1))
    slab = slab.at[_R_W2:_R_W2 + HIDDEN, :HIDDEN].set(w2)
    slab = slab.at[_R_B2, :HIDDEN].set(b2.reshape(-1))
    slab = slab.at[_R_WR1:_R_WR1 + HIDDEN, :HIDDEN].set(wr1)
    slab = slab.at[_R_BR1, :HIDDEN].set(br1.reshape(-1))
    slab = slab.at[_R_WR2:_R_WR2 + HIDDEN, :LATENT].set(wr2)
    slab = slab.at[_R_BR2, :LATENT].set(br2.reshape(-1))
    return slab


@jax.jit
def graph_encoder(x, adj, param_slab):
    """x: (B, N, F_IN) f32, adj: (B, N, N) f32 -> latent (B, LATENT) f32."""
    # stack all graphs on the sublane axis
    x_flat = x.reshape(BN, F_IN)

    # block-diagonal adjacency (BN, BN): messages for all graphs in one dot
    eye_b = jnp.eye(B, dtype=jnp.float32)
    adj_bd = (eye_b[:, None, :, None] * adj[:, :, None, :]).reshape(BN, BN)

    # pooling matrix: row b has ones over graph b's node rows; rows >= B are 0
    rows = lax.broadcasted_iota(jnp.int32, (OUT_ROWS, BN), 0)
    cols = lax.broadcasted_iota(jnp.int32, (OUT_ROWS, BN), 1)
    pool = (rows == cols // N).astype(jnp.float32)

    out_padded = pl.pallas_call(
        graph_encoder_kernel,
        out_shape=jax.ShapeDtypeStruct((OUT_ROWS, OUT_LANES), jnp.float32),
    )(x_flat, adj_bd, pool, param_slab)

    return out_padded[:B, :LATENT]


# ----------------------------- param init ----------------------------------
def init_params(key):
    def glorot(k, shape):
        fan_in, fan_out = shape
        scale = jnp.sqrt(2.0 / (fan_in + fan_out))
        return jax.random.normal(k, shape, dtype=jnp.float32) * scale

    ks = jax.random.split(key, 8)
    w_emb = glorot(ks[0], (F_IN, HIDDEN))
    b_emb = jnp.zeros((1, HIDDEN), jnp.float32)
    w1h = glorot(ks[1], (HIDDEN, HIDDEN))
    w1m = glorot(ks[2], (HIDDEN, HIDDEN))
    b1 = jnp.zeros((1, HIDDEN), jnp.float32)
    w2 = glorot(ks[3], (HIDDEN, HIDDEN))
    b2 = jnp.zeros((1, HIDDEN), jnp.float32)
    wr1 = glorot(ks[4], (HIDDEN, HIDDEN))
    br1 = jnp.zeros((1, HIDDEN), jnp.float32)
    wr2 = glorot(ks[5], (HIDDEN, LATENT))
    br2 = jnp.zeros((1, LATENT), jnp.float32)
    return (w_emb, b_emb, w1h, w1m, b1, w2, b2, wr1, br1, wr2, br2)


# ----------------------------- reference (pure JAX) -------------------------
def graph_encoder_ref(x, adj, params):
    (w_emb, b_emb, w1h, w1m, b1, w2, b2, wr1, br1, wr2, br2) = params
    h = jnp.maximum(jnp.einsum("bnf,fh->bnh", x, w_emb) + b_emb, 0.0)
    for _ in range(GNN_ITER):
        m = jnp.einsum("bnk,bkh->bnh", adj, h)
        z = jnp.maximum(h @ w1h + m @ w1m + b1, 0.0)
        h = jnp.maximum(z @ w2 + b2, 0.0)
    g = jnp.sum(h, axis=1)                       # (B, HIDDEN)
    r = jnp.maximum(g @ wr1 + br1, 0.0)
    return r @ wr2 + br2


# ----------------------------- main -----------------------------------------
if __name__ == "__main__":
    key = jax.random.PRNGKey(0)
    k_x, k_a, k_p = jax.random.split(key, 3)

    x = jax.random.normal(k_x, (B, N, F_IN), dtype=jnp.float32)
    # symmetric 0/1 adjacency with self loops
    raw = jax.random.uniform(k_a, (B, N, N))
    adj = (raw + jnp.swapaxes(raw, 1, 2) > 1.0).astype(jnp.float32)
    adj = jnp.maximum(adj, jnp.eye(N, dtype=jnp.float32)[None])

    params = init_params(k_p)
    slab = pack_params(params)

    latent = graph_encoder(x, adj, slab)
    latent = jax.block_until_ready(latent)

    ref = graph_encoder_ref(x, adj, params)
    assert latent.shape == (B, LATENT)
    assert jnp.allclose(latent, ref, atol=1e-4, rtol=1e-4), (
        f"mismatch: max abs diff {jnp.max(jnp.abs(latent - ref))}"
    )
    print("KERNEL_OK")
</pallas_src>

<mosaic_0001>
module attributes {stable_mosaic.version = 11 : i64} {
  func.func @graph_encoder_kernel(%arg0: memref<16x8xf32, #tpu.memory_space<vmem>>, %arg1: memref<16x16xf32, #tpu.memory_space<vmem>>, %arg2: memref<8x16xf32, #tpu.memory_space<vmem>>, %arg3: memref<208x128xf32, #tpu.memory_space<vmem>>, %arg4: memref<8x128xf32, #tpu.memory_space<vmem>>) attributes {dimension_semantics = [], scalar_prefetch = 0 : i64, scratch_operands = 0 : i64, tpu.core_type = #tpu.core_type<tc>} {
    %c0 = arith.constant 0 : index
    %c0_0 = arith.constant 0 : index
    %0 = vector.load %arg0[%c0, %c0_0] : memref<16x8xf32, #tpu.memory_space<vmem>>, vector<16x8xf32>
    %c0_1 = arith.constant 0 : index
    %c0_2 = arith.constant 0 : index
    %1 = vector.load %arg1[%c0_1, %c0_2] : memref<16x16xf32, #tpu.memory_space<vmem>>, vector<16x16xf32>
    %c0_3 = arith.constant 0 : index
    %c0_4 = arith.constant 0 : index
    %2 = vector.load %arg2[%c0_3, %c0_4] : memref<8x16xf32, #tpu.memory_space<vmem>>, vector<8x16xf32>
    %c0_5 = arith.constant 0 : index
    %c0_6 = arith.constant 0 : index
    %3 = vector.load %arg3[%c0_5, %c0_6] : memref<208x128xf32, #tpu.memory_space<vmem>>, vector<8x32xf32>
    %c8 = arith.constant 8 : index
    %c0_7 = arith.constant 0 : index
    %4 = vector.load %arg3[%c8, %c0_7] : memref<208x128xf32, #tpu.memory_space<vmem>>, vector<1x32xf32>
    %c16 = arith.constant 16 : index
    %c0_8 = arith.constant 0 : index
    %5 = vector.load %arg3[%c16, %c0_8] : memref<208x128xf32, #tpu.memory_space<vmem>>, vector<64x32xf32>
    %c80 = arith.constant 80 : index
    %c0_9 = arith.constant 0 : index
    %6 = vector.load %arg3[%c80, %c0_9] : memref<208x128xf32, #tpu.memory_space<vmem>>, vector<1x32xf32>
    %c88 = arith.constant 88 : index
    %c0_10 = arith.constant 0 : index
    %7 = vector.load %arg3[%c88, %c0_10] : memref<208x128xf32, #tpu.memory_space<vmem>>, vector<32x32xf32>
    %c120 = arith.constant 120 : index
    %c0_11 = arith.constant 0 : index
    %8 = vector.load %arg3[%c120, %c0_11] : memref<208x128xf32, #tpu.memory_space<vmem>>, vector<1x32xf32>
    %c128 = arith.constant 128 : index
    %c0_12 = arith.constant 0 : index
    %9 = vector.load %arg3[%c128, %c0_12] : memref<208x128xf32, #tpu.memory_space<vmem>>, vector<32x32xf32>
    %c160 = arith.constant 160 : index
    %c0_13 = arith.constant 0 : index
    %10 = vector.load %arg3[%c160, %c0_13] : memref<208x128xf32, #tpu.memory_space<vmem>>, vector<1x32xf32>
    %c168 = arith.constant 168 : index
    %c0_14 = arith.constant 0 : index
    %11 = vector.load %arg3[%c168, %c0_14] : memref<208x128xf32, #tpu.memory_space<vmem>>, vector<32x128xf32>
    %c200 = arith.constant 200 : index
    %c0_15 = arith.constant 0 : index
    %12 = vector.load %arg3[%c200, %c0_15] : memref<208x128xf32, #tpu.memory_space<vmem>>, vector<1x128xf32>
    %13 = vector.shape_cast %6 : vector<1x32xf32> to vector<1x32xf32>
    %14 = vector.broadcast %13 : vector<1x32xf32> to vector<16x32xf32>
    %15 = vector.shape_cast %8 : vector<1x32xf32> to vector<1x32xf32>
    %16 = vector.broadcast %15 : vector<1x32xf32> to vector<16x32xf32>
    %cst = arith.constant dense<0.000000e+00> : vector<16x32xf32>
    %17 = tpu.matmul %0, %3, %cst {dimension_numbers = #tpu.dot_dimension_numbers<[1], [0], [0], [1], [0, 0, 1, 1], [], []>} : vector<16x8xf32>, vector<8x32xf32>, vector<16x32xf32> -> vector<16x32xf32>
    %18 = vector.shape_cast %4 : vector<1x32xf32> to vector<1x32xf32>
    %19 = vector.broadcast %18 : vector<1x32xf32> to vector<16x32xf32>
    %20 = arith.addf %17, %19 : vector<16x32xf32>
    %cst_16 = arith.constant 0.000000e+00 : f32
    %21 = vector.broadcast %cst_16 : f32 to vector<16x32xf32>
    %22 = arith.maximumf %20, %21 : vector<16x32xf32>
    %c0_i32 = arith.constant 0 : i32
    %cst_17 = arith.constant dense<0.000000e+00> : vector<16x32xf32>
    %23 = tpu.matmul %1, %22, %cst_17 {dimension_numbers = #tpu.dot_dimension_numbers<[1], [0], [0], [1], [0, 0, 1, 1], [], []>} : vector<16x16xf32>, vector<16x32xf32>, vector<16x32xf32> -> vector<16x32xf32>
    %24 = tpu.concatenate %22, %23 in 1 : vector<16x32xf32>, vector<16x32xf32> -> vector<16x64xf32>
    %cst_18 = arith.constant dense<0.000000e+00> : vector<16x32xf32>
    %25 = tpu.matmul %24, %5, %cst_18 {dimension_numbers = #tpu.dot_dimension_numbers<[1], [0], [0], [1], [0, 0, 1, 1], [], []>} : vector<16x64xf32>, vector<64x32xf32>, vector<16x32xf32> -> vector<16x32xf32>
    %26 = arith.addf %25, %14 : vector<16x32xf32>
    %cst_19 = arith.constant 0.000000e+00 : f32
    %27 = vector.broadcast %cst_19 : f32 to vector<16x32xf32>
    %28 = arith.maximumf %26, %27 : vector<16x32xf32>
    %cst_20 = arith.constant dense<0.000000e+00> : vector<16x32xf32>
    %29 = tpu.matmul %28, %7, %cst_20 {dimension_numbers = #tpu.dot_dimension_numbers<[1], [0], [0], [1], [0, 0, 1, 1], [], []>} : vector<16x32xf32>, vector<32x32xf32>, vector<16x32xf32> -> vector<16x32xf32>
    %30 = arith.addf %29, %16 : vector<16x32xf32>
    %cst_21 = arith.constant 0.000000e+00 : f32
    %31 = vector.broadcast %cst_21 : f32 to vector<16x32xf32>
    %32 = arith.maximumf %30, %31 : vector<16x32xf32>
    %c1_i32 = arith.constant 1 : i32
    %cst_22 = arith.constant dense<0.000000e+00> : vector<16x32xf32>
    %33 = tpu.matmul %1, %32, %cst_22 {dimension_numbers = #tpu.dot_dimension_numbers<[1], [0], [0], [1], [0, 0, 1, 1], [], []>} : vector<16x16xf32>, vector<16x32xf32>, vector<16x32xf32> -> vector<16x32xf32>
    %34 = tpu.concatenate %32, %33 in 1 : vector<16x32xf32>, vector<16x32xf32> -> vector<16x64xf32>
    %cst_23 = arith.constant dense<0.000000e+00> : vector<16x32xf32>
    %35 = tpu.matmul %34, %5, %cst_23 {dimension_numbers = #tpu.dot_dimension_numbers<[1], [0], [0], [1], [0, 0, 1, 1], [], []>} : vector<16x64xf32>, vector<64x32xf32>, vector<16x32xf32> -> vector<16x32xf32>
    %36 = arith.addf %35, %14 : vector<16x32xf32>
    %cst_24 = arith.constant 0.000000e+00 : f32
    %37 = vector.broadcast %cst_24 : f32 to vector<16x32xf32>
    %38 = arith.maximumf %36, %37 : vector<16x32xf32>
    %cst_25 = arith.constant dense<0.000000e+00> : vector<16x32xf32>
    %39 = tpu.matmul %38, %7, %cst_25 {dimension_numbers = #tpu.dot_dimension_numbers<[1], [0], [0], [1], [0, 0, 1, 1], [], []>} : vector<16x32xf32>, vector<32x32xf32>, vector<16x32xf32> -> vector<16x32xf32>
    %40 = arith.addf %39, %16 : vector<16x32xf32>
    %cst_26 = arith.constant 0.000000e+00 : f32
    %41 = vector.broadcast %cst_26 : f32 to vector<16x32xf32>
    %42 = arith.maximumf %40, %41 : vector<16x32xf32>
    %c2_i32 = arith.constant 2 : i32
    %cst_27 = arith.constant dense<0.000000e+00> : vector<16x32xf32>
    %43 = tpu.matmul %1, %42, %cst_27 {dimension_numbers = #tpu.dot_dimension_numbers<[1], [0], [0], [1], [0, 0, 1, 1], [], []>} : vector<16x16xf32>, vector<16x32xf32>, vector<16x32xf32> -> vector<16x32xf32>
    %44 = tpu.concatenate %42, %43 in 1 : vector<16x32xf32>, vector<16x32xf32> -> vector<16x64xf32>
    %cst_28 = arith.constant dense<0.000000e+00> : vector<16x32xf32>
    %45 = tpu.matmul %44, %5, %cst_28 {dimension_numbers = #tpu.dot_dimension_numbers<[1], [0], [0], [1], [0, 0, 1, 1], [], []>} : vector<16x64xf32>, vector<64x32xf32>, vector<16x32xf32> -> vector<16x32xf32>
    %46 = arith.addf %45, %14 : vector<16x32xf32>
    %cst_29 = arith.constant 0.000000e+00 : f32
    %47 = vector.broadcast %cst_29 : f32 to vector<16x32xf32>
    %48 = arith.maximumf %46, %47 : vector<16x32xf32>
    %cst_30 = arith.constant dense<0.000000e+00> : vector<16x32xf32>
    %49 = tpu.matmul %48, %7, %cst_30 {dimension_numbers = #tpu.dot_dimension_numbers<[1], [0], [0], [1], [0, 0, 1, 1], [], []>} : vector<16x32xf32>, vector<32x32xf32>, vector<16x32xf32> -> vector<16x32xf32>
    %50 = arith.addf %49, %16 : vector<16x32xf32>
    %cst_31 = arith.constant 0.000000e+00 : f32
    %51 = vector.broadcast %cst_31 : f32 to vector<16x32xf32>
    %52 = arith.maximumf %50, %51 : vector<16x32xf32>
    %cst_32 = arith.constant dense<0.000000e+00> : vector<8x32xf32>
    %53 = tpu.matmul %2, %52, %cst_32 {dimension_numbers = #tpu.dot_dimension_numbers<[1], [0], [0], [1], [0, 0, 1, 1], [], []>} : vector<8x16xf32>, vector<16x32xf32>, vector<8x32xf32> -> vector<8x32xf32>
    %cst_33 = arith.constant dense<0.000000e+00> : vector<8x32xf32>
    %54 = tpu.matmul %53, %9, %cst_33 {dimension_numbers = #tpu.dot_dimension_numbers<[1], [0], [0], [1], [0, 0, 1, 1], [], []>} : vector<8x32xf32>, vector<32x32xf32>, vector<8x32xf32> -> vector<8x32xf32>
    %55 = vector.shape_cast %10 : vector<1x32xf32> to vector<1x32xf32>
    %56 = vector.broadcast %55 : vector<1x32xf32> to vector<8x32xf32>
    %57 = arith.addf %54, %56 : vector<8x32xf32>
    %cst_34 = arith.constant 0.000000e+00 : f32
    %58 = vector.broadcast %cst_34 : f32 to vector<8x32xf32>
    %59 = arith.maximumf %57, %58 : vector<8x32xf32>
    %cst_35 = arith.constant dense<0.000000e+00> : vector<8x128xf32>
    %60 = tpu.matmul %59, %11, %cst_35 {dimension_numbers = #tpu.dot_dimension_numbers<[1], [0], [0], [1], [0, 0, 1, 1], [], []>} : vector<8x32xf32>, vector<32x128xf32>, vector<8x128xf32> -> vector<8x128xf32>
    %61 = vector.shape_cast %12 : vector<1x128xf32> to vector<1x128xf32>
    %62 = vector.broadcast %61 : vector<1x128xf32> to vector<8x128xf32>
    %63 = arith.addf %60, %62 : vector<8x128xf32>
    %c0_36 = arith.constant 0 : index
    %c0_37 = arith.constant 0 : index
    %64 = vector.load %arg4[%c0_36, %c0_37] : memref<8x128xf32, #tpu.memory_space<vmem>>, vector<8x128xf32>
    tpu.vector_store %arg4[%c0_36, %c0_37], %63 {strides = array<i32>} : memref<8x128xf32, #tpu.memory_space<vmem>>, vector<8x128xf32>,
    return
  }
}

</mosaic_0001>

<llo_original>
// kernel: graph_encoder.1
$region0: #{graph_encoder.1}
  #allocation0 [shape = 'u32[]', space=smem, size = 0x4, offset = 0x4, fixed_abs, tag = 'smem constant byte address 0x4 - core index']
  #allocation1 [shape = 'u32[144,128]{1,0:T(1,128)}', space=vmem, size = 0x12000, scoped, tag = 'internal scratch']
  %s0 = inlined_call_operand.vmem [shape: f32[16,8], index: 0, kind: input, shape index: {}]
  %s1 = inlined_call_operand.vmem [shape: f32[16,16], index: 1, kind: input, shape index: {}]
  %s2 = inlined_call_operand.vmem [shape: f32[8,16], index: 2, kind: input, shape index: {}]
  %s3 = inlined_call_operand.hbm [shape: f32[208,128], index: 3, kind: input, shape index: {}]
  %s4 = inlined_call_operand.vmem [shape: f32[8,128], index: 4, kind: output, shape index: {}]
  %s5 = sld [smem:[#allocation0]]
  $region30: #{graph_encoder.1} parent=0
    _
  %s7 = ssub.s32 1, %s5
  %s8 = scalar_select 0, %s7, %s5
  $region1: #{graph_encoder.1} parent=0
    #allocation2 [shape = 'u8[106496]{0}', space=vmem, size = 0x1a000, scoped, tag = 'input window, operand 3, single buffered']
    #allocation3 [shape = 's32[1]{0}', space=sflag, size = 0x4, scoped, tag = 'scoped memory for graph_encoder.1']
    %9 = vsyncpa [#allocation3], 0
    // Predicated region
    $region2: #{graph_encoder.1} parent=1 // pred_check
      _
    $region3: #{graph_encoder.1} parent=1 // pred_check_branch
      %11 = sbr.rel (0) target = $region5
    $region4: #{graph_encoder.1} parent=1 // pred_region
      _
    $region5: #{graph_encoder.1} parent=1 // pred_fallthru
      _
    // Predicated region
    $region6: #{graph_encoder.1} parent=1 // pred_check
      _
    $region7: #{graph_encoder.1} parent=1 // pred_check_branch
      %13 = sbr.rel (0) target = $region9
    $region8: #{graph_encoder.1} parent=1 // pred_region
      _
    $region9: #{graph_encoder.1} parent=1 // pred_fallthru
      _
    // Predicated region
    $region10: #{graph_encoder.1} parent=1 // pred_check
      _
    $region11: #{graph_encoder.1} parent=1 // pred_check_branch
      %15 = sbr.rel (0) target = $region13
    $region12: #{graph_encoder.1} parent=1 // pred_region
      _
    $region13: #{graph_encoder.1} parent=1 // pred_fallthru
      _
    // Predicated region
    $region14: #{graph_encoder.1} parent=1 // pred_check
      _
    $region15: #{graph_encoder.1} parent=1 // pred_check_branch
      %17 = sbr.rel (0) target = $region17
    $region16: #{graph_encoder.1} parent=1 // pred_region
      %s19 = ssub.s32 3328, 3328
      %20 = vsyncadd [#allocation3], %s19
      %s21 = sshll.u32 [#allocation2], 4
      %s22 = int_to_ptr.vmem [resolvable:$true] %s21
      %27 = dma.hbm_to_vmem [thread:$0]  %s3, 3328, %s22, [#allocation3], 128, 128, 8
    $region17: #{graph_encoder.1} parent=1 // pred_fallthru
      _
    // Predicated region
    $region18: #{graph_encoder.1} parent=1 // pred_check
      _
    $region19: #{graph_encoder.1} parent=1 // pred_check_branch
      %29 = sbr.rel (0) target = $region21
    $region20: #{graph_encoder.1} parent=1 // pred_region
      %30 = dma.done [#allocation3], 3328
    $region21: #{graph_encoder.1} parent=1 // pred_fallthru
      _
    %v31 = vld [vmem:[%s0] sm:$0xff]
    %v32 = vld [vmem:[%s0 + $0x8] sm:$0xff]
    %v33 = vld [vmem:[%s1] sm:$0xff]
    %v34 = vld [vmem:[%s1 + $0x8] sm:$0xff]
    %v35 = vld [vmem:[%s2] sm:$0xff]
    %v36 = vld [vmem:[#allocation2] sm:$0xff]
    %v37 = vld [vmem:[#allocation2 + $0x8] sm:$0x1]
    %v38 = vld [vmem:[#allocation2 + $0x10] sm:$0xff]
    %v39 = vld [vmem:[#allocation2 + $0x18] sm:$0xff]
    %v40 = vld [vmem:[#allocation2 + $0x20] sm:$0xff]
    %v41 = vld [vmem:[#allocation2 + $0x28] sm:$0xff]
    %v42 = vld [vmem:[#allocation2 + $0x30] sm:$0xff]
    %v43 = vld [vmem:[#allocation2 + $0x38] sm:$0xff]
    %v44 = vld [vmem:[#allocation2 + $0x40] sm:$0xff]
    %v45 = vld [vmem:[#allocation2 + $0x48] sm:$0xff]
    %v46 = vld [vmem:[#allocation2 + $0x50] sm:$0x1]
    %v47 = vld [vmem:[#allocation2 + $0x58] sm:$0xff]
    %v48 = vld [vmem:[#allocation2 + $0x60] sm:$0xff]
    %v49 = vld [vmem:[#allocation2 + $0x68] sm:$0xff]
    %v50 = vld [vmem:[#allocation2 + $0x70] sm:$0xff]
    %v51 = vld [vmem:[#allocation2 + $0x78] sm:$0x1]
    %v52 = vld [vmem:[#allocation2 + $0x80] sm:$0xff]
    %v53 = vld [vmem:[#allocation2 + $0x88] sm:$0xff]
    %v54 = vld [vmem:[#allocation2 + $0x90] sm:$0xff]
    %v55 = vld [vmem:[#allocation2 + $0x98] sm:$0xff]
    %v56 = vld [vmem:[#allocation2 + $0xa0] sm:$0x1]
    %v57 = vld [vmem:[#allocation2 + $0xa8] sm:$0xff]
    %v58 = vld [vmem:[#allocation2 + $0xb0] sm:$0xff]
    %v59 = vld [vmem:[#allocation2 + $0xb8] sm:$0xff]
    %v60 = vld [vmem:[#allocation2 + $0xc0] sm:$0xff]
    %v61 = vld [vmem:[#allocation2 + $0xc8] sm:$0x1]
    %v62 = vlaneseq
    %v63 = vshrl.u32 %v62, 7
    %v64 = vsub.s32 0, %v63
    %v65 = vrot.slane %v46, %v64
    %v66 = vlaneseq
    %v67 = vshrl.u32 %v66, 7
    %v68 = vsub.s32 0, %v67
    %v69 = vrot.slane %v51, %v68
    %v70 = vlaneseq
    %v71 = vshrl.u32 %v70, 7
    %v72 = vsub.s32 0, %v71
    %v73 = vrot.slane %v37, %v72
    %vm74 = vcmask 64512
    %v76 = vsel %vm74, %v31, 0
    %v79 = vsel %vm74, %v32, 0
    %81 = vmatprep.subr.mxu0 0.0
    %82 = vmatpush1.msra.mxu0 %v36
    %83 = vmatprep.subr.mxu0 0.0
    %84 = vmatpush1.msra.mxu0 0.0
    %85 = vmatprep.subr.mxu0 0.0
    %86 = vmatpush1.msra.mxu0 0.0
    %87 = vmatprep.subr.mxu0 0.0
    %88 = vmatpush1.msra.mxu0 0.0
    %89 = vmatprep.subr.mxu0 0.0
    %90 = vmatpush1.msra.mxu0 0.0
    %91 = vmatprep.subr.mxu0 0.0
    %92 = vmatpush1.msra.mxu0 0.0
    %93 = vmatprep.subr.mxu0 0.0
    %94 = vmatpush1.msra.mxu0 0.0
    %95 = vmatprep.subr.mxu0 0.0
    %96 = vmatpush1.msra.mxu0 0.0
    %97 = vmatprep.subr.mxu0 0.0
    %98 = vmatpush1.msra.mxu0 0.0
    %99 = vmatprep.subr.mxu0 0.0
    %100 = vmatpush1.msra.mxu0 0.0
    %101 = vmatprep.subr.mxu0 0.0
    %102 = vmatpush1.msra.mxu0 0.0
    %103 = vmatprep.subr.mxu0 0.0
    %104 = vmatpush1.msra.mxu0 0.0
    %105 = vmatprep.subr.mxu0 0.0
    %106 = vmatpush1.msra.mxu0 0.0
    %107 = vmatprep.subr.mxu0 0.0
    %108 = vmatpush1.msra.mxu0 0.0
    %109 = vmatprep.subr.mxu0 0.0
    %110 = vmatpush1.msra.mxu0 0.0
    %111 = vmatprep.subr.mxu0 0.0
    %112 = vmatpush1.msra.mxu0 0.0
    %113 = vmatprep.subr.mxu0 0.0
    %114 = vmatpush1.msra.mxu0 0.0
    %115 = vmatprep.subr.mxu0 0.0
    %116 = vmatpush1.msra.mxu0 0.0
    %117 = vmatprep.subr.mxu0 0.0
    %118 = vmatpush1.msra.mxu0 0.0
    %119 = vmatprep.subr.mxu0 0.0
    %120 = vmatpush1.msra.mxu0 0.0
    %121 = vmatprep.subr.mxu0 0.0
    %122 = vmatpush1.msra.mxu0 0.0
    %123 = vmatprep.subr.mxu0 0.0
    %124 = vmatpush1.msra.mxu0 0.0
    %125 = vmatprep.subr.mxu0 0.0
    %126 = vmatpush1.msra.mxu0 0.0
    %127 = vmatprep.subr.mxu0 0.0
    %128 = vmatpush1.msra.mxu0 0.0
    %129 = vmatprep.subr.mxu0 0.0
    %130 = vmatpush1.msra.mxu0 0.0
    %131 = vmatprep.subr.mxu0 0.0
    %132 = vmatpush1.msra.mxu0 0.0
    %133 = vmatprep.subr.mxu0 0.0
    %134 = vmatpush1.msra.mxu0 0.0
    %135 = vmatprep.subr.mxu0 0.0
    %136 = vmatpush1.msra.mxu0 0.0
    %137 = vmatprep.subr.mxu0 0.0
    %138 = vmatpush1.msra.mxu0 0.0
    %139 = vmatprep.subr.mxu0 0.0
    %140 = vmatpush1.msra.mxu0 0.0
    %141 = vmatprep.subr.mxu0 0.0
    %142 = vmatpush1.msra.mxu0 0.0
    %143 = vmatprep.subr.mxu0 0.0
    %144 = vmatpush1.msra.mxu0 0.0
    %145 = vmatprep.mubr.f32.mxu0 0.0
    %146 = vmatmul.mubr.f32.gmra.mrb[0].mxu0 %v76
    %v147 = vpop.f32.mrb[0].mxu0
    %v148 = vadd.f32 %v73, %v147
    %v149 = vpop.f32.mrb[0].mxu0
    %150 = vmatprep.mubr.f32.mxu0 0.0
    %151 = vmatmul.mubr.f32.gmra.mrb[0].mxu0 %v79
    %v152 = vpop.f32.mrb[0].mxu0
    %v153 = vadd.f32 %v73, %v152
    %v154 = vpop.f32.mrb[0].mxu0
    %155 = vdwg.mxu0
    %v156 = vmax.f32 %v148, 0.0
    %v157 = vmax.f32 %v153, 0.0
    %vm158 = vcmask 130048
    %v160 = vsel %vm158, %v33, 0
    %v163 = vsel %vm158, %v34, 0
    %165 = vmatprep.subr.mxu0 0.0
    %166 = vmatpush1.msra.mxu0 %v156
    %167 = vmatprep.subr.mxu0 0.0
    %168 = vmatpush1.msra.mxu0 %v157
    %169 = vmatprep.subr.mxu0 0.0
    %170 = vmatpush1.msra.mxu0 0.0
    %171 = vmatprep.subr.mxu0 0.0
    %172 = vmatpush1.msra.mxu0 0.0
    %173 = vmatprep.subr.mxu0 0.0
    %174 = vmatpush1.msra.mxu0 0.0
    %175 = vmatprep.subr.mxu0 0.0
    %176 = vmatpush1.msra.mxu0 0.0
    %177 = vmatprep.subr.mxu0 0.0
    %178 = vmatpush1.msra.mxu0 0.0
    %179 = vmatprep.subr.mxu0 0.0
    %180 = vmatpush1.msra.mxu0 0.0
    %181 = vmatprep.subr.mxu0 0.0
    %182 = vmatpush1.msra.mxu0 0.0
    %183 = vmatprep.subr.mxu0 0.0
    %184 = vmatpush1.msra.mxu0 0.0
    %185 = vmatprep.subr.mxu0 0.0
    %186 = vmatpush1.msra.mxu0 0.0
    %187 = vmatprep.subr.mxu0 0.0
    %188 = vmatpush1.msra.mxu0 0.0
    %189 = vmatprep.subr.mxu0 0.0
    %190 = vmatpush1.msra.mxu0 0.0
    %191 = vmatprep.subr.mxu0 0.0
    %192 = vmatpush1.msra.mxu0 0.0
    %193 = vmatprep.subr.mxu0 0.0
    %194 = vmatpush1.msra.mxu0 0.0
    %195 = vmatprep.subr.mxu0 0.0
    %196 = vmatpush1.msra.mxu0 0.0
    %197 = vmatprep.subr.mxu0 0.0
    %198 = vmatpush1.msra.mxu0 0.0
    %199 = vmatprep.subr.mxu0 0.0
    %200 = vmatpush1.msra.mxu0 0.0
    %201 = vmatprep.subr.mxu0 0.0
    %202 = vmatpush1.msra.mxu0 0.0
    %203 = vmatprep.subr.mxu0 0.0
    %204 = vmatpush1.msra.mxu0 0.0
    %205 = vmatprep.subr.mxu0 0.0
    %206 = vmatpush1.msra.mxu0 0.0
    %207 = vmatprep.subr.mxu0 0.0
    %208 = vmatpush1.msra.mxu0 0.0
    %209 = vmatprep.subr.mxu0 0.0
    %210 = vmatpush1.msra.mxu0 0.0
    %211 = vmatprep.subr.mxu0 0.0
    %212 = vmatpush1.msra.mxu0 0.0
    %213 = vmatprep.subr.mxu0 0.0
    %214 = vmatpush1.msra.mxu0 0.0
    %215 = vmatprep.subr.mxu0 0.0
    %216 = vmatpush1.msra.mxu0 0.0
    %217 = vmatprep.subr.mxu0 0.0
    %218 = vmatpush1.msra.mxu0 0.0
    %219 = vmatprep.subr.mxu0 0.0
    %220 = vmatpush1.msra.mxu0 0.0
    %221 = vmatprep.subr.mxu0 0.0
    %222 = vmatpush1.msra.mxu0 0.0
    %223 = vmatprep.subr.mxu0 0.0
    %224 = vmatpush1.msra.mxu0 0.0
    %225 = vmatprep.subr.mxu0 0.0
    %226 = vmatpush1.msra.mxu0 0.0
    %227 = vmatprep.subr.mxu0 0.0
    %228 = vmatpush1.msra.mxu0 0.0
    %229 = vmatprep.mubr.f32.mxu0 0.0
    %230 = vmatmul.mubr.f32.gmra.mrb[0].mxu0 %v160
    %v231 = vpop.f32.mrb[0].mxu0
    %v232 = vadd.f32 0.0, %v231
    %v233 = vpop.f32.mrb[0].mxu0
    %234 = vmatprep.mubr.f32.mxu0 0.0
    %235 = vmatmul.mubr.f32.gmra.mrb[0].mxu0 %v163
    %v236 = vpop.f32.mrb[0].mxu0
    %v237 = vadd.f32 0.0, %v236
    %v238 = vpop.f32.mrb[0].mxu0
    %239 = vdwg.mxu0
    %242 = vrot.lane.b32.xlu0 %v232, 32
    %v243 = vpop.permute.xlu0 %242
    %244 = vrot.lane.b32.xlu0 %v237, 32
    %v245 = vpop.permute.xlu0 %244
    %vm248 = vcmask 261120
    %v249 = vsel %vm248, %v156, %v243
    %v250 = vsel %vm248, %v157, %v245
    %vm251 = vcmask 523264
    %v253 = vsel %vm251, %v249, 0
    %v256 = vsel %vm251, %v250, 0
    %258 = vmatprep.subr.mxu0 0.0
    %259 = vmatpush1.msra.mxu0 %v38
    %260 = vmatprep.subr.mxu0 0.0
    %261 = vmatpush1.msra.mxu0 %v39
    %262 = vmatprep.subr.mxu0 0.0
    %263 = vmatpush1.msra.mxu0 %v40
    %264 = vmatprep.subr.mxu0 0.0
    %265 = vmatpush1.msra.mxu0 %v41
    %266 = vmatprep.subr.mxu0 0.0
    %267 = vmatpush1.msra.mxu0 %v42
    %268 = vmatprep.subr.mxu0 0.0
    %269 = vmatpush1.msra.mxu0 %v43
    %270 = vmatprep.subr.mxu0 0.0
    %271 = vmatpush1.msra.mxu0 %v44
    %272 = vmatprep.subr.mxu0 0.0
    %273 = vmatpush1.msra.mxu0 %v45
    %274 = vmatprep.subr.mxu0 0.0
    %275 = vmatpush1.msra.mxu0 0.0
    %276 = vmatprep.subr.mxu0 0.0
    %277 = vmatpush1.msra.mxu0 0.0
    %278 = vmatprep.subr.mxu0 0.0
    %279 = vmatpush1.msra.mxu0 0.0
    %280 = vmatprep.subr.mxu0 0.0
    %281 = vmatpush1.msra.mxu0 0.0
    %282 = vmatprep.subr.mxu0 0.0
    %283 = vmatpush1.msra.mxu0 0.0
    %284 = vmatprep.subr.mxu0 0.0
    %285 = vmatpush1.msra.mxu0 0.0
    %286 = vmatprep.subr.mxu0 0.0
    %287 = vmatpush1.msra.mxu0 0.0
    %288 = vmatprep.subr.mxu0 0.0
    %289 = vmatpush1.msra.mxu0 0.0
    %290 = vmatprep.subr.mxu0 0.0
    %291 = vmatpush1.msra.mxu0 0.0
    %292 = vmatprep.subr.mxu0 0.0
    %293 = vmatpush1.msra.mxu0 0.0
    %294 = vmatprep.subr.mxu0 0.0
    %295 = vmatpush1.msra.mxu0 0.0
    %296 = vmatprep.subr.mxu0 0.0
    %297 = vmatpush1.msra.mxu0 0.0
    %298 = vmatprep.subr.mxu0 0.0
    %299 = vmatpush1.msra.mxu0 0.0
    %300 = vmatprep.subr.mxu0 0.0
    %301 = vmatpush1.msra.mxu0 0.0
    %302 = vmatprep.subr.mxu0 0.0
    %303 = vmatpush1.msra.mxu0 0.0
    %304 = vmatprep.subr.mxu0 0.0
    %305 = vmatpush1.msra.mxu0 0.0
    %306 = vmatprep.subr.mxu0 0.0
    %307 = vmatpush1.msra.mxu0 0.0
    %308 = vmatprep.subr.mxu0 0.0
    %309 = vmatpush1.msra.mxu0 0.0
    %310 = vmatprep.subr.mxu0 0.0
    %311 = vmatpush1.msra.mxu0 0.0
    %312 = vmatprep.subr.mxu0 0.0
    %313 = vmatpush1.msra.mxu0 0.0
    %314 = vmatprep.subr.mxu0 0.0
    %315 = vmatpush1.msra.mxu0 0.0
    %316 = vmatprep.subr.mxu0 0.0
    %317 = vmatpush1.msra.mxu0 0.0
    %318 = vmatprep.subr.mxu0 0.0
    %319 = vmatpush1.msra.mxu0 0.0
    %320 = vmatprep.subr.mxu0 0.0
    %321 = vmatpush1.msra.mxu0 0.0
    %322 = vmatprep.mubr.f32.mxu0 0.0
    %323 = vmatmul.mubr.f32.gmra.mrb[0].mxu0 %v253
    %v324 = vpop.f32.mrb[0].mxu0
    %v325 = vadd.f32 %v65, %v324
    %v326 = vpop.f32.mrb[0].mxu0
    %327 = vmatprep.mubr.f32.mxu0 0.0
    %328 = vmatmul.mubr.f32.gmra.mrb[0].mxu0 %v256
    %v329 = vpop.f32.mrb[0].mxu0
    %v330 = vadd.f32 %v65, %v329
    %v331 = vpop.f32.mrb[0].mxu0
    %332 = vdwg.mxu0
    %v333 = vmax.f32 %v325, 0.0
    %v334 = vmax.f32 %v330, 0.0
    %v336 = vsel %vm248, %v333, 0
    %v339 = vsel %vm248, %v334, 0
    %341 = vmatprep.subr.mxu0 0.0
    %342 = vmatpush1.msra.mxu0 %v47
    %343 = vmatprep.subr.mxu0 0.0
    %344 = vmatpush1.msra.mxu0 %v48
    %345 = vmatprep.subr.mxu0 0.0
    %346 = vmatpush1.msra.mxu0 %v49
    %347 = vmatprep.subr.mxu0 0.0
    %348 = vmatpush1.msra.mxu0 %v50
    %349 = vmatprep.subr.mxu0 0.0
    %350 = vmatpush1.msra.mxu0 0.0
    %351 = vmatprep.subr.mxu0 0.0
    %352 = vmatpush1.msra.mxu0 0.0
    %353 = vmatprep.subr.mxu0 0.0
    %354 = vmatpush1.msra.mxu0 0.0
    %355 = vmatprep.subr.mxu0 0.0
    %356 = vmatpush1.msra.mxu0 0.0
    %357 = vmatprep.subr.mxu0 0.0
    %358 = vmatpush1.msra.mxu0 0.0
    %359 = vmatprep.subr.mxu0 0.0
    %360 = vmatpush1.msra.mxu0 0.0
    %361 = vmatprep.subr.mxu0 0.0
    %362 = vmatpush1.msra.mxu0 0.0
    %363 = vmatprep.subr.mxu0 0.0
    %364 = vmatpush1.msra.mxu0 0.0
    %365 = vmatprep.subr.mxu0 0.0
    %366 = vmatpush1.msra.mxu0 0.0
    %367 = vmatprep.subr.mxu0 0.0
    %368 = vmatpush1.msra.mxu0 0.0
    %369 = vmatprep.subr.mxu0 0.0
    %370 = vmatpush1.msra.mxu0 0.0
    %371 = vmatprep.subr.mxu0 0.0
    %372 = vmatpush1.msra.mxu0 0.0
    %373 = vmatprep.subr.mxu0 0.0
    %374 = vmatpush1.msra.mxu0 0.0
    %375 = vmatprep.subr.mxu0 0.0
    %376 = vmatpush1.msra.mxu0 0.0
    %377 = vmatprep.subr.mxu0 0.0
    %378 = vmatpush1.msra.mxu0 0.0
    %379 = vmatprep.subr.mxu0 0.0
    %380 = vmatpush1.msra.mxu0 0.0
    %381 = vmatprep.subr.mxu0 0.0
    %382 = vmatpush1.msra.mxu0 0.0
    %383 = vmatprep.subr.mxu0 0.0
    %384 = vmatpush1.msra.mxu0 0.0
    %385 = vmatprep.subr.mxu0 0.0
    %386 = vmatpush1.msra.mxu0 0.0
    %387 = vmatprep.subr.mxu0 0.0
    %388 = vmatpush1.msra.mxu0 0.0
    %389 = vmatprep.subr.mxu0 0.0
    %390 = vmatpush1.msra.mxu0 0.0
    %391 = vmatprep.subr.mxu0 0.0
    %392 = vmatpush1.msra.mxu0 0.0
    %393 = vmatprep.subr.mxu0 0.0
    %394 = vmatpush1.msra.mxu0 0.0
    %395 = vmatprep.subr.mxu0 0.0
    %396 = vmatpush1.msra.mxu0 0.0
    %397 = vmatprep.subr.mxu0 0.0
    %398 = vmatpush1.msra.mxu0 0.0
    %399 = vmatprep.subr.mxu0 0.0
    %400 = vmatpush1.msra.mxu0 0.0
    %401 = vmatprep.subr.mxu0 0.0
    %402 = vmatpush1.msra.mxu0 0.0
    %403 = vmatprep.subr.mxu0 0.0
    %404 = vmatpush1.msra.mxu0 0.0
    %405 = vmatprep.mubr.f32.mxu0 0.0
    %406 = vmatmul.mubr.f32.gmra.mrb[0].mxu0 %v336
    %v407 = vpop.f32.mrb[0].mxu0
    %v408 = vadd.f32 %v69, %v407
    %v409 = vpop.f32.mrb[0].mxu0
    %410 = vmatprep.mubr.f32.mxu0 0.0
    %411 = vmatmul.mubr.f32.gmra.mrb[0].mxu0 %v339
    %v412 = vpop.f32.mrb[0].mxu0
    %v413 = vadd.f32 %v69, %v412
    %v414 = vpop.f32.mrb[0].mxu0
    %415 = vdwg.mxu0
    %v416 = vmax.f32 %v408, 0.0
    %v417 = vmax.f32 %v413, 0.0
    %418 = vmatprep.subr.mxu0 0.0
    %419 = vmatpush1.msra.mxu0 %v416
    %420 = vmatprep.subr.mxu0 0.0
    %421 = vmatpush1.msra.mxu0 %v417
    %422 = vmatprep.subr.mxu0 0.0
    %423 = vmatpush1.msra.mxu0 0.0
    %424 = vmatprep.subr.mxu0 0.0
    %425 = vmatpush1.msra.mxu0 0.0
    %426 = vmatprep.subr.mxu0 0.0
    %427 = vmatpush1.msra.mxu0 0.0
    %428 = vmatprep.subr.mxu0 0.0
    %429 = vmatpush1.msra.mxu0 0.0
    %430 = vmatprep.subr.mxu0 0.0
    %431 = vmatpush1.msra.mxu0 0.0
    %432 = vmatprep.subr.mxu0 0.0
    %433 = vmatpush1.msra.mxu0 0.0
    %434 = vmatprep.subr.mxu0 0.0
    %435 = vmatpush1.msra.mxu0 0.0
    %436 = vmatprep.subr.mxu0 0.0
    %437 = vmatpush1.msra.mxu0 0.0
    %438 = vmatprep.subr.mxu0 0.0
    %439 = vmatpush1.msra.mxu0 0.0
    %440 = vmatprep.subr.mxu0 0.0
    %441 = vmatpush1.msra.mxu0 0.0
    %442 = vmatprep.subr.mxu0 0.0
    %443 = vmatpush1.msra.mxu0 0.0
    %444 = vmatprep.subr.mxu0 0.0
    %445 = vmatpush1.msra.mxu0 0.0
    %446 = vmatprep.subr.mxu0 0.0
    %447 = vmatpush1.msra.mxu0 0.0
    %448 = vmatprep.subr.mxu0 0.0
    %449 = vmatpush1.msra.mxu0 0.0
    %450 = vmatprep.subr.mxu0 0.0
    %451 = vmatpush1.msra.mxu0 0.0
    %452 = vmatprep.subr.mxu0 0.0
    %453 = vmatpush1.msra.mxu0 0.0
    %454 = vmatprep.subr.mxu0 0.0
    %455 = vmatpush1.msra.mxu0 0.0
    %456 = vmatprep.subr.mxu0 0.0
    %457 = vmatpush1.msra.mxu0 0.0
    %458 = vmatprep.subr.mxu0 0.0
    %459 = vmatpush1.msra.mxu0 0.0
    %460 = vmatprep.subr.mxu0 0.0
    %461 = vmatpush1.msra.mxu0 0.0
    %462 = vmatprep.subr.mxu0 0.0
    %463 = vmatpush1.msra.mxu0 0.0
    %464 = vmatprep.subr.mxu0 0.0
    %465 = vmatpush1.msra.mxu0 0.0
    %466 = vmatprep.subr.mxu0 0.0
    %467 = vmatpush1.msra.mxu0 0.0
    %468 = vmatprep.subr.mxu0 0.0
    %469 = vmatpush1.msra.mxu0 0.0
    %470 = vmatprep.subr.mxu0 0.0
    %471 = vmatpush1.msra.mxu0 0.0
    %472 = vmatprep.subr.mxu0 0.0
    %473 = vmatpush1.msra.mxu0 0.0
    %474 = vmatprep.subr.mxu0 0.0
    %475 = vmatpush1.msra.mxu0 0.0
    %476 = vmatprep.subr.mxu0 0.0
    %477 = vmatpush1.msra.mxu0 0.0
    %478 = vmatprep.subr.mxu0 0.0
    %479 = vmatpush1.msra.mxu0 0.0
    %480 = vmatprep.subr.mxu0 0.0
    %481 = vmatpush1.msra.mxu0 0.0
    %482 = vmatprep.mubr.f32.mxu0 0.0
    %483 = vmatmul.mubr.f32.gmra.mrb[0].mxu0 %v160
    %v484 = vpop.f32.mrb[0].mxu0
    %v485 = vadd.f32 0.0, %v484
    %v486 = vpop.f32.mrb[0].mxu0
    %487 = vmatprep.mubr.f32.mxu0 0.0
    %488 = vmatmul.mubr.f32.gmra.mrb[0].mxu0 %v163
    %v489 = vpop.f32.mrb[0].mxu0
    %v490 = vadd.f32 0.0, %v489
    %v491 = vpop.f32.mrb[0].mxu0
    %492 = vdwg.mxu0
    %495 = vrot.lane.b32.xlu0 %v485, 32
    %v496 = vpop.permute.xlu0 %495
    %497 = vrot.lane.b32.xlu0 %v490, 32
    %v498 = vpop.permute.xlu0 %497
    %v501 = vsel %vm248, %v416, %v496
    %v502 = vsel %vm248, %v417, %v498
    %v504 = vsel %vm251, %v501, 0
    %v507 = vsel %vm251, %v502, 0
    %509 = vmatprep.subr.mxu0 0.0
    %510 = vmatpush1.msra.mxu0 %v38
    %511 = vmatprep.subr.mxu0 0.0
    %512 = vmatpush1.msra.mxu0 %v39
    %513 = vmatprep.subr.mxu0 0.0
    %514 = vmatpush1.msra.mxu0 %v40
    %515 = vmatprep.subr.mxu0 0.0
    %516 = vmatpush1.msra.mxu0 %v41
    %517 = vmatprep.subr.mxu0 0.0
    %518 = vmatpush1.msra.mxu0 %v42
    %519 = vmatprep.subr.mxu0 0.0
    %520 = vmatpush1.msra.mxu0 %v43
    %521 = vmatprep.subr.mxu0 0.0
    %522 = vmatpush1.msra.mxu0 %v44
    %523 = vmatprep.subr.mxu0 0.0
    %524 = vmatpush1.msra.mxu0 %v45
    %525 = vmatprep.subr.mxu0 0.0
    %526 = vmatpush1.msra.mxu0 0.0
    %527 = vmatprep.subr.mxu0 0.0
    %528 = vmatpush1.msra.mxu0 0.0
    %529 = vmatprep.subr.mxu0 0.0
    %530 = vmatpush1.msra.mxu0 0.0
    %531 = vmatprep.subr.mxu0 0.0
    %532 = vmatpush1.msra.mxu0 0.0
    %533 = vmatprep.subr.mxu0 0.0
    %534 = vmatpush1.msra.mxu0 0.0
    %535 = vmatprep.subr.mxu0 0.0
    %536 = vmatpush1.msra.mxu0 0.0
    %537 = vmatprep.subr.mxu0 0.0
    %538 = vmatpush1.msra.mxu0 0.0
    %539 = vmatprep.subr.mxu0 0.0
    %540 = vmatpush1.msra.mxu0 0.0
    %541 = vmatprep.subr.mxu0 0.0
    %542 = vmatpush1.msra.mxu0 0.0
    %543 = vmatprep.subr.mxu0 0.0
    %544 = vmatpush1.msra.mxu0 0.0
    %545 = vmatprep.subr.mxu0 0.0
    %546 = vmatpush1.msra.mxu0 0.0
    %547 = vmatprep.subr.mxu0 0.0
    %548 = vmatpush1.msra.mxu0 0.0
    %549 = vmatprep.subr.mxu0 0.0
    %550 = vmatpush1.msra.mxu0 0.0
    %551 = vmatprep.subr.mxu0 0.0
    %552 = vmatpush1.msra.mxu0 0.0
    %553 = vmatprep.subr.mxu0 0.0
    %554 = vmatpush1.msra.mxu0 0.0
    %555 = vmatprep.subr.mxu0 0.0
    %556 = vmatpush1.msra.mxu0 0.0
    %557 = vmatprep.subr.mxu0 0.0
    %558 = vmatpush1.msra.mxu0 0.0
    %559 = vmatprep.subr.mxu0 0.0
    %560 = vmatpush1.msra.mxu0 0.0
    %561 = vmatprep.subr.mxu0 0.0
    %562 = vmatpush1.msra.mxu0 0.0
    %563 = vmatprep.subr.mxu0 0.0
    %564 = vmatpush1.msra.mxu0 0.0
    %565 = vmatprep.subr.mxu0 0.0
    %566 = vmatpush1.msra.mxu0 0.0
    %567 = vmatprep.subr.mxu0 0.0
    %568 = vmatpush1.msra.mxu0 0.0
    %569 = vmatprep.subr.mxu0 0.0
    %570 = vmatpush1.msra.mxu0 0.0
    %571 = vmatprep.subr.mxu0 0.0
    %572 = vmatpush1.msra.mxu0 0.0
    %573 = vmatprep.mubr.f32.mxu0 0.0
    %574 = vmatmul.mubr.f32.gmra.mrb[0].mxu0 %v504
    %v575 = vpop.f32.mrb[0].mxu0
    %v576 = vadd.f32 %v65, %v575
    %v577 = vpop.f32.mrb[0].mxu0
    %578 = vmatprep.mubr.f32.mxu0 0.0
    %579 = vmatmul.mubr.f32.gmra.mrb[0].mxu0 %v507
    %v580 = vpop.f32.mrb[0].mxu0
    %v581 = vadd.f32 %v65, %v580
    %v582 = vpop.f32.mrb[0].mxu0
    %583 = vdwg.mxu0
    %v584 = vmax.f32 %v576, 0.0
    %v585 = vmax.f32 %v581, 0.0
    %v587 = vsel %vm248, %v584, 0
    %v590 = vsel %vm248, %v585, 0
    %592 = vmatprep.subr.mxu0 0.0
    %593 = vmatpush1.msra.mxu0 %v47
    %594 = vmatprep.subr.mxu0 0.0
    %595 = vmatpush1.msra.mxu0 %v48
    %596 = vmatprep.subr.mxu0 0.0
    %597 = vmatpush1.msra.mxu0 %v49
    %598 = vmatprep.subr.mxu0 0.0
    %599 = vmatpush1.msra.mxu0 %v50
    %600 = vmatprep.subr.mxu0 0.0
    %601 = vmatpush1.msra.mxu0 0.0
    %602 = vmatprep.subr.mxu0 0.0
    %603 = vmatpush1.msra.mxu0 0.0
    %604 = vmatprep.subr.mxu0 0.0
    %605 = vmatpush1.msra.mxu0 0.0
    %606 = vmatprep.subr.mxu0 0.0
    %607 = vmatpush1.msra.mxu0 0.0
    %608 = vmatprep.subr.mxu0 0.0
    %609 = vmatpush1.msra.mxu0 0.0
    %610 = vmatprep.subr.mxu0 0.0
    %611 = vmatpush1.msra.mxu0 0.0
    %612 = vmatprep.subr.mxu0 0.0
    %613 = vmatpush1.msra.mxu0 0.0
    %614 = vmatprep.subr.mxu0 0.0
    %615 = vmatpush1.msra.mxu0 0.0
    %616 = vmatprep.subr.mxu0 0.0
    %617 = vmatpush1.msra.mxu0 0.0
    %618 = vmatprep.subr.mxu0 0.0
    %619 = vmatpush1.msra.mxu0 0.0
    %620 = vmatprep.subr.mxu0 0.0
    %621 = vmatpush1.msra.mxu0 0.0
    %622 = vmatprep.subr.mxu0 0.0
    %623 = vmatpush1.msra.mxu0 0.0
    %624 = vmatprep.subr.mxu0 0.0
    %625 = vmatpush1.msra.mxu0 0.0
    %626 = vmatprep.subr.mxu0 0.0
    %627 = vmatpush1.msra.mxu0 0.0
    %628 = vmatprep.subr.mxu0 0.0
    %629 = vmatpush1.msra.mxu0 0.0
    %630 = vmatprep.subr.mxu0 0.0
    %631 = vmatpush1.msra.mxu0 0.0
    %632 = vmatprep.subr.mxu0 0.0
    %633 = vmatpush1.msra.mxu0 0.0
    %634 = vmatprep.subr.mxu0 0.0
    %635 = vmatpush1.msra.mxu0 0.0
    %636 = vmatprep.subr.mxu0 0.0
    %637 = vmatpush1.msra.mxu0 0.0
    %638 = vmatprep.subr.mxu0 0.0
    %639 = vmatpush1.msra.mxu0 0.0
    %640 = vmatprep.subr.mxu0 0.0
    %641 = vmatpush1.msra.mxu0 0.0
    %642 = vmatprep.subr.mxu0 0.0
    %643 = vmatpush1.msra.mxu0 0.0
    %644 = vmatprep.subr.mxu0 0.0
    %645 = vmatpush1.msra.mxu0 0.0
    %646 = vmatprep.subr.mxu0 0.0
    %647 = vmatpush1.msra.mxu0 0.0
    %648 = vmatprep.subr.mxu0 0.0
    %649 = vmatpush1.msra.mxu0 0.0
    %650 = vmatprep.subr.mxu0 0.0
    %651 = vmatpush1.msra.mxu0 0.0
    %652 = vmatprep.subr.mxu0 0.0
    %653 = vmatpush1.msra.mxu0 0.0
    %654 = vmatprep.subr.mxu0 0.0
    %655 = vmatpush1.msra.mxu0 0.0
    %656 = vmatprep.mubr.f32.mxu0 0.0
    %657 = vmatmul.mubr.f32.gmra.mrb[0].mxu0 %v587
    %v658 = vpop.f32.mrb[0].mxu0
    %v659 = vadd.f32 %v69, %v658
    %v660 = vpop.f32.mrb[0].mxu0
    %661 = vmatprep.mubr.f32.mxu0 0.0
    %662 = vmatmul.mubr.f32.gmra.mrb[0].mxu0 %v590
    %v663 = vpop.f32.mrb[0].mxu0
    %v664 = vadd.f32 %v69, %v663
    %v665 = vpop.f32.mrb[0].mxu0
    %666 = vdwg.mxu0
    %v667 = vmax.f32 %v659, 0.0
    %v668 = vmax.f32 %v664, 0.0
    %669 = vmatprep.subr.mxu0 0.0
    %670 = vmatpush1.msra.mxu0 %v667
    %671 = vmatprep.subr.mxu0 0.0
    %672 = vmatpush1.msra.mxu0 %v668
    %673 = vmatprep.subr.mxu0 0.0
    %674 = vmatpush1.msra.mxu0 0.0
    %675 = vmatprep.subr.mxu0 0.0
    %676 = vmatpush1.msra.mxu0 0.0
    %677 = vmatprep.subr.mxu0 0.0
    %678 = vmatpush1.msra.mxu0 0.0
    %679 = vmatprep.subr.mxu0 0.0
    %680 = vmatpush1.msra.mxu0 0.0
    %681 = vmatprep.subr.mxu0 0.0
    %682 = vmatpush1.msra.mxu0 0.0
    %683 = vmatprep.subr.mxu0 0.0
    %684 = vmatpush1.msra.mxu0 0.0
    %685 = vmatprep.subr.mxu0 0.0
    %686 = vmatpush1.msra.mxu0 0.0
    %687 = vmatprep.subr.mxu0 0.0
    %688 = vmatpush1.msra.mxu0 0.0
    %689 = vmatprep.subr.mxu0 0.0
    %690 = vmatpush1.msra.mxu0 0.0
    %691 = vmatprep.subr.mxu0 0.0
    %692 = vmatpush1.msra.mxu0 0.0
    %693 = vmatprep.subr.mxu0 0.0
    %694 = vmatpush1.msra.mxu0 0.0
    %695 = vmatprep.subr.mxu0 0.0
    %696 = vmatpush1.msra.mxu0 0.0
    %697 = vmatprep.subr.mxu0 0.0
    %698 = vmatpush1.msra.mxu0 0.0
    %699 = vmatprep.subr.mxu0 0.0
    %700 = vmatpush1.msra.mxu0 0.0
    %701 = vmatprep.subr.mxu0 0.0
    %702 = vmatpush1.msra.mxu0 0.0
    %703 = vmatprep.subr.mxu0 0.0
    %704 = vmatpush1.msra.mxu0 0.0
    %705 = vmatprep.subr.mxu0 0.0
    %706 = vmatpush1.msra.mxu0 0.0
    %707 = vmatprep.subr.mxu0 0.0
    %708 = vmatpush1.msra.mxu0 0.0
    %709 = vmatprep.subr.mxu0 0.0
    %710 = vmatpush1.msra.mxu0 0.0
    %711 = vmatprep.subr.mxu0 0.0
    %712 = vmatpush1.msra.mxu0 0.0
    %713 = vmatprep.subr.mxu0 0.0
    %714 = vmatpush1.msra.mxu0 0.0
    %715 = vmatprep.subr.mxu0 0.0
    %716 = vmatpush1.msra.mxu0 0.0
    %717 = vmatprep.subr.mxu0 0.0
    %718 = vmatpush1.msra.mxu0 0.0
    %719 = vmatprep.subr.mxu0 0.0
    %720 = vmatpush1.msra.mxu0 0.0
    %721 = vmatprep.subr.mxu0 0.0
    %722 = vmatpush1.msra.mxu0 0.0
    %723 = vmatprep.subr.mxu0 0.0
    %724 = vmatpush1.msra.mxu0 0.0
    %725 = vmatprep.subr.mxu0 0.0
    %726 = vmatpush1.msra.mxu0 0.0
    %727 = vmatprep.subr.mxu0 0.0
    %728 = vmatpush1.msra.mxu0 0.0
    %729 = vmatprep.subr.mxu0 0.0
    %730 = vmatpush1.msra.mxu0 0.0
    %731 = vmatprep.subr.mxu0 0.0
    %732 = vmatpush1.msra.mxu0 0.0
    %733 = vmatprep.mubr.f32.mxu0 0.0
    %734 = vmatmul.mubr.f32.gmra.mrb[0].mxu0 %v160
    %v735 = vpop.f32.mrb[0].mxu0
    %v736 = vadd.f32 0.0, %v735
    %v737 = vpop.f32.mrb[0].mxu0
    %738 = vmatprep.mubr.f32.mxu0 0.0
    %739 = vmatmul.mubr.f32.gmra.mrb[0].mxu0 %v163
    %v740 = vpop.f32.mrb[0].mxu0
    %v741 = vadd.f32 0.0, %v740
    %v742 = vpop.f32.mrb[0].mxu0
    %743 = vdwg.mxu0
    %746 = vrot.lane.b32.xlu0 %v736, 32
    %v747 = vpop.permute.xlu0 %746
    %748 = vrot.lane.b32.xlu0 %v741, 32
    %v749 = vpop.permute.xlu0 %748
    %v752 = vsel %vm248, %v667, %v747
    %v753 = vsel %vm248, %v668, %v749
    %v755 = vsel %vm251, %v752, 0
    %v758 = vsel %vm251, %v753, 0
    %760 = vmatprep.subr.mxu0 0.0
    %761 = vmatpush1.msra.mxu0 %v38
    %762 = vmatprep.subr.mxu0 0.0
    %763 = vmatpush1.msra.mxu0 %v39
    %764 = vmatprep.subr.mxu0 0.0
    %765 = vmatpush1.msra.mxu0 %v40
    %766 = vmatprep.subr.mxu0 0.0
    %767 = vmatpush1.msra.mxu0 %v41
    %768 = vmatprep.subr.mxu0 0.0
    %769 = vmatpush1.msra.mxu0 %v42
    %770 = vmatprep.subr.mxu0 0.0
    %771 = vmatpush1.msra.mxu0 %v43
    %772 = vmatprep.subr.mxu0 0.0
    %773 = vmatpush1.msra.mxu0 %v44
    %774 = vmatprep.subr.mxu0 0.0
    %775 = vmatpush1.msra.mxu0 %v45
    %776 = vmatprep.subr.mxu0 0.0
    %777 = vmatpush1.msra.mxu0 0.0
    %778 = vmatprep.subr.mxu0 0.0
    %779 = vmatpush1.msra.mxu0 0.0
    %780 = vmatprep.subr.mxu0 0.0
    %781 = vmatpush1.msra.mxu0 0.0
    %782 = vmatprep.subr.mxu0 0.0
    %783 = vmatpush1.msra.mxu0 0.0
    %784 = vmatprep.subr.mxu0 0.0
    %785 = vmatpush1.msra.mxu0 0.0
    %786 = vmatprep.subr.mxu0 0.0
    %787 = vmatpush1.msra.mxu0 0.0
    %788 = vmatprep.subr.mxu0 0.0
    %789 = vmatpush1.msra.mxu0 0.0
    %790 = vmatprep.subr.mxu0 0.0
    %791 = vmatpush1.msra.mxu0 0.0
    %792 = vmatprep.subr.mxu0 0.0
    %793 = vmatpush1.msra.mxu0 0.0
    %794 = vmatprep.subr.mxu0 0.0
    %795 = vmatpush1.msra.mxu0 0.0
    %796 = vmatprep.subr.mxu0 0.0
    %797 = vmatpush1.msra.mxu0 0.0
    %798 = vmatprep.subr.mxu0 0.0
    %799 = vmatpush1.msra.mxu0 0.0
    %800 = vmatprep.subr.mxu0 0.0
    %801 = vmatpush1.msra.mxu0 0.0
    %802 = vmatprep.subr.mxu0 0.0
    %803 = vmatpush1.msra.mxu0 0.0
    %804 = vmatprep.subr.mxu0 0.0
    %805 = vmatpush1.msra.mxu0 0.0
    %806 = vmatprep.subr.mxu0 0.0
    %807 = vmatpush1.msra.mxu0 0.0
    %808 = vmatprep.subr.mxu0 0.0
    %809 = vmatpush1.msra.mxu0 0.0
    %810 = vmatprep.subr.mxu0 0.0
    %811 = vmatpush1.msra.mxu0 0.0
    %812 = vmatprep.subr.mxu0 0.0
    %813 = vmatpush1.msra.mxu0 0.0
    %814 = vmatprep.subr.mxu0 0.0
    %815 = vmatpush1.msra.mxu0 0.0
    %816 = vmatprep.subr.mxu0 0.0
    %817 = vmatpush1.msra.mxu0 0.0
    %818 = vmatprep.subr.mxu0 0.0
    %819 = vmatpush1.msra.mxu0 0.0
    %820 = vmatprep.subr.mxu0 0.0
    %821 = vmatpush1.msra.mxu0 0.0
    %822 = vmatprep.subr.mxu0 0.0
    %823 = vmatpush1.msra.mxu0 0.0
    %824 = vmatprep.mubr.f32.mxu0 0.0
    %825 = vmatmul.mubr.f32.gmra.mrb[0].mxu0 %v755
    %v826 = vpop.f32.mrb[0].mxu0
    %v827 = vadd.f32 %v65, %v826
    %v828 = vpop.f32.mrb[0].mxu0
    %829 = vmatprep.mubr.f32.mxu0 0.0
    %830 = vmatmul.mubr.f32.gmra.mrb[0].mxu0 %v758
    %v831 = vpop.f32.mrb[0].mxu0
    %v832 = vadd.f32 %v65, %v831
    %v833 = vpop.f32.mrb[0].mxu0
    %834 = vdwg.mxu0
    %v835 = vmax.f32 %v827, 0.0
    %v836 = vmax.f32 %v832, 0.0
    %v838 = vsel %vm248, %v835, 0
    %v841 = vsel %vm248, %v836, 0
    %843 = vmatprep.subr.mxu0 0.0
    %844 = vmatpush1.msra.mxu0 %v47
    %845 = vmatprep.subr.mxu0 0.0
    %846 = vmatpush1.msra.mxu0 %v48
    %847 = vmatprep.subr.mxu0 0.0
    %848 = vmatpush1.msra.mxu0 %v49
    %849 = vmatprep.subr.mxu0 0.0
    %850 = vmatpush1.msra.mxu0 %v50
    %851 = vmatprep.subr.mxu0 0.0
    %852 = vmatpush1.msra.mxu0 0.0
    %853 = vmatprep.subr.mxu0 0.0
    %854 = vmatpush1.msra.mxu0 0.0
    %855 = vmatprep.subr.mxu0 0.0
    %856 = vmatpush1.msra.mxu0 0.0
    %857 = vmatprep.subr.mxu0 0.0
    %858 = vmatpush1.msra.mxu0 0.0
    %859 = vmatprep.subr.mxu0 0.0
    %860 = vmatpush1.msra.mxu0 0.0
    %861 = vmatprep.subr.mxu0 0.0
    %862 = vmatpush1.msra.mxu0 0.0
    %863 = vmatprep.subr.mxu0 0.0
    %864 = vmatpush1.msra.mxu0 0.0
    %865 = vmatprep.subr.mxu0 0.0
    %866 = vmatpush1.msra.mxu0 0.0
    %867 = vmatprep.subr.mxu0 0.0
    %868 = vmatpush1.msra.mxu0 0.0
    %869 = vmatprep.subr.mxu0 0.0
    %870 = vmatpush1.msra.mxu0 0.0
    %871 = vmatprep.subr.mxu0 0.0
    %872 = vmatpush1.msra.mxu0 0.0
    %873 = vmatprep.subr.mxu0 0.0
    %874 = vmatpush1.msra.mxu0 0.0
    %875 = vmatprep.subr.mxu0 0.0
    %876 = vmatpush1.msra.mxu0 0.0
    %877 = vmatprep.subr.mxu0 0.0
    %878 = vmatpush1.msra.mxu0 0.0
    %879 = vmatprep.subr.mxu0 0.0
    %880 = vmatpush1.msra.mxu0 0.0
    %881 = vmatprep.subr.mxu0 0.0
    %882 = vmatpush1.msra.mxu0 0.0
    %883 = vmatprep.subr.mxu0 0.0
    %884 = vmatpush1.msra.mxu0 0.0
    %885 = vmatprep.subr.mxu0 0.0
    %886 = vmatpush1.msra.mxu0 0.0
    %887 = vmatprep.subr.mxu0 0.0
    %888 = vmatpush1.msra.mxu0 0.0
    %889 = vmatprep.subr.mxu0 0.0
    %890 = vmatpush1.msra.mxu0 0.0
    %891 = vmatprep.subr.mxu0 0.0
    %892 = vmatpush1.msra.mxu0 0.0
    %893 = vmatprep.subr.mxu0 0.0
    %894 = vmatpush1.msra.mxu0 0.0
    %895 = vmatprep.subr.mxu0 0.0
    %896 = vmatpush1.msra.mxu0 0.0
    %897 = vmatprep.subr.mxu0 0.0
    %898 = vmatpush1.msra.mxu0 0.0
    %899 = vmatprep.subr.mxu0 0.0
    %900 = vmatpush1.msra.mxu0 0.0
    %901 = vmatprep.subr.mxu0 0.0
    %902 = vmatpush1.msra.mxu0 0.0
    %903 = vmatprep.subr.mxu0 0.0
    %904 = vmatpush1.msra.mxu0 0.0
    %905 = vmatprep.subr.mxu0 0.0
    %906 = vmatpush1.msra.mxu0 0.0
    %907 = vmatprep.mubr.f32.mxu0 0.0
    %908 = vmatmul.mubr.f32.gmra.mrb[0].mxu0 %v838
    %v909 = vpop.f32.mrb[0].mxu0
    %v910 = vadd.f32 %v69, %v909
    %v911 = vpop.f32.mrb[0].mxu0
    %912 = vmatprep.mubr.f32.mxu0 0.0
    %913 = vmatmul.mubr.f32.gmra.mrb[0].mxu0 %v841
    %v914 = vpop.f32.mrb[0].mxu0
    %v915 = vadd.f32 %v69, %v914
    %v916 = vpop.f32.mrb[0].mxu0
    %917 = vdwg.mxu0
    %v918 = vmax.f32 %v910, 0.0
    %v919 = vmax.f32 %v915, 0.0
    %v921 = vsel %vm158, %v35, 0
    %923 = vmatprep.subr.mxu0 0.0
    %924 = vmatpush1.msra.mxu0 %v918
    %925 = vmatprep.subr.mxu0 0.0
    %926 = vmatpush1.msra.mxu0 %v919
    %927 = vmatprep.subr.mxu0 0.0
    %928 = vmatpush1.msra.mxu0 0.0
    %929 = vmatprep.subr.mxu0 0.0
    %930 = vmatpush1.msra.mxu0 0.0
    %931 = vmatprep.subr.mxu0 0.0
    %932 = vmatpush1.msra.mxu0 0.0
    %933 = vmatprep.subr.mxu0 0.0
    %934 = vmatpush1.msra.mxu0 0.0
    %935 = vmatprep.subr.mxu0 0.0
    %936 = vmatpush1.msra.mxu0 0.0
    %937 = vmatprep.subr.mxu0 0.0
    %938 = vmatpush1.msra.mxu0 0.0
    %939 = vmatprep.subr.mxu0 0.0
    %940 = vmatpush1.msra.mxu0 0.0
    %941 = vmatprep.subr.mxu0 0.0
    %942 = vmatpush1.msra.mxu0 0.0
    %943 = vmatprep.subr.mxu0 0.0
    %944 = vmatpush1.msra.mxu0 0.0
    %945 = vmatprep.subr.mxu0 0.0
    %946 = vmatpush1.msra.mxu0 0.0
    %947 = vmatprep.subr.mxu0 0.0
    %948 = vmatpush1.msra.mxu0 0.0
    %949 = vmatprep.subr.mxu0 0.0
    %950 = vmatpush1.msra.mxu0 0.0
    %951 = vmatprep.subr.mxu0 0.0
    %952 = vmatpush1.msra.mxu0 0.0
    %953 = vmatprep.subr.mxu0 0.0
    %954 = vmatpush1.msra.mxu0 0.0
    %955 = vmatprep.subr.mxu0 0.0
    %956 = vmatpush1.msra.mxu0 0.0
    %957 = vmatprep.subr.mxu0 0.0
    %958 = vmatpush1.msra.mxu0 0.0
    %959 = vmatprep.subr.mxu0 0.0
    %960 = vmatpush1.msra.mxu0 0.0
    %961 = vmatprep.subr.mxu0 0.0
    %962 = vmatpush1.msra.mxu0 0.0
    %963 = vmatprep.subr.mxu0 0.0
    %964 = vmatpush1.msra.mxu0 0.0
    %965 = vmatprep.subr.mxu0 0.0
    %966 = vmatpush1.msra.mxu0 0.0
    %967 = vmatprep.subr.mxu0 0.0
    %968 = vmatpush1.msra.mxu0 0.0
    %969 = vmatprep.subr.mxu0 0.0
    %970 = vmatpush1.msra.mxu0 0.0
    %971 = vmatprep.subr.mxu0 0.0
    %972 = vmatpush1.msra.mxu0 0.0
    %973 = vmatprep.subr.mxu0 0.0
    %974 = vmatpush1.msra.mxu0 0.0
    %975 = vmatprep.subr.mxu0 0.0
    %976 = vmatpush1.msra.mxu0 0.0
    %977 = vmatprep.subr.mxu0 0.0
    %978 = vmatpush1.msra.mxu0 0.0
    %979 = vmatprep.subr.mxu0 0.0
    %980 = vmatpush1.msra.mxu0 0.0
    %981 = vmatprep.subr.mxu0 0.0
    %982 = vmatpush1.msra.mxu0 0.0
    %983 = vmatprep.subr.mxu0 0.0
    %984 = vmatpush1.msra.mxu0 0.0
    %985 = vmatprep.subr.mxu0 0.0
    %986 = vmatpush1.msra.mxu0 0.0
    %987 = vmatprep.mubr.f32.mxu0 0.0
    %988 = vmatmul.mubr.f32.gmra.mrb[0].mxu0 %v921
    %v989 = vpop.f32.mrb[0].mxu0
    %v990 = vadd.f32 0.0, %v989
    %v991 = vpop.f32.mrb[0].mxu0
    %992 = vdwg.mxu0
    %v993 = vlaneseq
    %v994 = vshrl.u32 %v993, 7
    %v995 = vsub.s32 0, %v994
    %v996 = vrot.slane %v56, %v995
    %v998 = vsel %vm248, %v990, 0
    %1000 = vmatprep.subr.mxu0 0.0
    %1001 = vmatpush1.msra.mxu0 %v52
    %1002 = vmatprep.subr.mxu0 0.0
    %1003 = vmatpush1.msra.mxu0 %v53
    %1004 = vmatprep.subr.mxu0 0.0
    %1005 = vmatpush1.msra.mxu0 %v54
    %1006 = vmatprep.subr.mxu0 0.0
    %1007 = vmatpush1.msra.mxu0 %v55
    %1008 = vmatprep.subr.mxu0 0.0
    %1009 = vmatpush1.msra.mxu0 0.0
    %1010 = vmatprep.subr.mxu0 0.0
    %1011 = vmatpush1.msra.mxu0 0.0
    %1012 = vmatprep.subr.mxu0 0.0
    %1013 = vmatpush1.msra.mxu0 0.0
    %1014 = vmatprep.subr.mxu0 0.0
    %1015 = vmatpush1.msra.mxu0 0.0
    %1016 = vmatprep.subr.mxu0 0.0
    %1017 = vmatpush1.msra.mxu0 0.0
    %1018 = vmatprep.subr.mxu0 0.0
    %1019 = vmatpush1.msra.mxu0 0.0
    %1020 = vmatprep.subr.mxu0 0.0
    %1021 = vmatpush1.msra.mxu0 0.0
    %1022 = vmatprep.subr.mxu0 0.0
    %1023 = vmatpush1.msra.mxu0 0.0
    %1024 = vmatprep.subr.mxu0 0.0
    %1025 = vmatpush1.msra.mxu0 0.0
    %1026 = vmatprep.subr.mxu0 0.0
    %1027 = vmatpush1.msra.mxu0 0.0
    %1028 = vmatprep.subr.mxu0 0.0
    %1029 = vmatpush1.msra.mxu0 0.0
    %1030 = vmatprep.subr.mxu0 0.0
    %1031 = vmatpush1.msra.mxu0 0.0
    %1032 = vmatprep.subr.mxu0 0.0
    %1033 = vmatpush1.msra.mxu0 0.0
    %1034 = vmatprep.subr.mxu0 0.0
    %1035 = vmatpush1.msra.mxu0 0.0
    %1036 = vmatprep.subr.mxu0 0.0
    %1037 = vmatpush1.msra.mxu0 0.0
    %1038 = vmatprep.subr.mxu0 0.0
    %1039 = vmatpush1.msra.mxu0 0.0
    %1040 = vmatprep.subr.mxu0 0.0
    %1041 = vmatpush1.msra.mxu0 0.0
    %1042 = vmatprep.subr.mxu0 0.0
    %1043 = vmatpush1.msra.mxu0 0.0
    %1044 = vmatprep.subr.mxu0 0.0
    %1045 = vmatpush1.msra.mxu0 0.0
    %1046 = vmatprep.subr.mxu0 0.0
    %1047 = vmatpush1.msra.mxu0 0.0
    %1048 = vmatprep.subr.mxu0 0.0
    %1049 = vmatpush1.msra.mxu0 0.0
    %1050 = vmatprep.subr.mxu0 0.0
    %1051 = vmatpush1.msra.mxu0 0.0
    %1052 = vmatprep.subr.mxu0 0.0
    %1053 = vmatpush1.msra.mxu0 0.0
    %1054 = vmatprep.subr.mxu0 0.0
    %1055 = vmatpush1.msra.mxu0 0.0
    %1056 = vmatprep.subr.mxu0 0.0
    %1057 = vmatpush1.msra.mxu0 0.0
    %1058 = vmatprep.subr.mxu0 0.0
    %1059 = vmatpush1.msra.mxu0 0.0
    %1060 = vmatprep.subr.mxu0 0.0
    %1061 = vmatpush1.msra.mxu0 0.0
    %1062 = vmatprep.subr.mxu0 0.0
    %1063 = vmatpush1.msra.mxu0 0.0
    %1064 = vmatprep.mubr.f32.mxu0 0.0
    %1065 = vmatmul.mubr.f32.gmra.mrb[0].mxu0 %v998
    %v1066 = vpop.f32.mrb[0].mxu0
    %v1067 = vadd.f32 %v996, %v1066
    %v1068 = vpop.f32.mrb[0].mxu0
    %1069 = vdwg.mxu0
    %v1070 = vmax.f32 %v1067, 0.0
    %v1071 = vlaneseq
    %v1072 = vshrl.u32 %v1071, 7
    %v1073 = vsub.s32 0, %v1072
    %v1074 = vrot.slane %v61, %v1073
    %v1076 = vsel %vm248, %v1070, 0
    %1078 = vmatprep.subr.mxu0 0.0
    %1079 = vmatpush1.msra.mxu0 %v57
    %1080 = vmatprep.subr.mxu0 0.0
    %1081 = vmatpush1.msra.mxu0 %v58
    %1082 = vmatprep.subr.mxu0 0.0
    %1083 = vmatpush1.msra.mxu0 %v59
    %1084 = vmatprep.subr.mxu0 0.0
    %1085 = vmatpush1.msra.mxu0 %v60
    %1086 = vmatprep.subr.mxu0 0.0
    %1087 = vmatpush1.msra.mxu0 0.0
    %1088 = vmatprep.subr.mxu0 0.0
    %1089 = vmatpush1.msra.mxu0 0.0
    %1090 = vmatprep.subr.mxu0 0.0
    %1091 = vmatpush1.msra.mxu0 0.0
    %1092 = vmatprep.subr.mxu0 0.0
    %1093 = vmatpush1.msra.mxu0 0.0
    %1094 = vmatprep.subr.mxu0 0.0
    %1095 = vmatpush1.msra.mxu0 0.0
    %1096 = vmatprep.subr.mxu0 0.0
    %1097 = vmatpush1.msra.mxu0 0.0
    %1098 = vmatprep.subr.mxu0 0.0
    %1099 = vmatpush1.msra.mxu0 0.0
    %1100 = vmatprep.subr.mxu0 0.0
    %1101 = vmatpush1.msra.mxu0 0.0
    %1102 = vmatprep.subr.mxu0 0.0
    %1103 = vmatpush1.msra.mxu0 0.0
    %1104 = vmatprep.subr.mxu0 0.0
    %1105 = vmatpush1.msra.mxu0 0.0
    %1106 = vmatprep.subr.mxu0 0.0
    %1107 = vmatpush1.msra.mxu0 0.0
    %1108 = vmatprep.subr.mxu0 0.0
    %1109 = vmatpush1.msra.mxu0 0.0
    %1110 = vmatprep.subr.mxu0 0.0
    %1111 = vmatpush1.msra.mxu0 0.0
    %1112 = vmatprep.subr.mxu0 0.0
    %1113 = vmatpush1.msra.mxu0 0.0
    %1114 = vmatprep.subr.mxu0 0.0
    %1115 = vmatpush1.msra.mxu0 0.0
    %1116 = vmatprep.subr.mxu0 0.0
    %1117 = vmatpush1.msra.mxu0 0.0
    %1118 = vmatprep.subr.mxu0 0.0
    %1119 = vmatpush1.msra.mxu0 0.0
    %1120 = vmatprep.subr.mxu0 0.0
    %1121 = vmatpush1.msra.mxu0 0.0
    %1122 = vmatprep.subr.mxu0 0.0
    %1123 = vmatpush1.msra.mxu0 0.0
    %1124 = vmatprep.subr.mxu0 0.0
    %1125 = vmatpush1.msra.mxu0 0.0
    %1126 = vmatprep.subr.mxu0 0.0
    %1127 = vmatpush1.msra.mxu0 0.0
    %1128 = vmatprep.subr.mxu0 0.0
    %1129 = vmatpush1.msra.mxu0 0.0
    %1130 = vmatprep.subr.mxu0 0.0
    %1131 = vmatpush1.msra.mxu0 0.0
    %1132 = vmatprep.subr.mxu0 0.0
    %1133 = vmatpush1.msra.mxu0 0.0
    %1134 = vmatprep.subr.mxu0 0.0
    %1135 = vmatpush1.msra.mxu0 0.0
    %1136 = vmatprep.subr.mxu0 0.0
    %1137 = vmatpush1.msra.mxu0 0.0
    %1138 = vmatprep.subr.mxu0 0.0
    %1139 = vmatpush1.msra.mxu0 0.0
    %1140 = vmatprep.subr.mxu0 0.0
    %1141 = vmatpush1.msra.mxu0 0.0
    %1142 = vmatprep.mubr.f32.mxu0 0.0
    %1143 = vmatmul.mubr.f32.gmra.mrb[0].mxu0 %v1076
    %v1144 = vpop.f32.mrb[0].mxu0
    %v1145 = vadd.f32 %v1074, %v1144
    %v1146 = vpop.f32.mrb[0].mxu0
    %1147 = vdwg.mxu0
    %1148 = vst [vmem:[%s4] sm:$0xff] %v1145
    // Predicated region
    $region22: #{graph_encoder.1} parent=1 // pred_check
      _
    $region23: #{graph_encoder.1} parent=1 // pred_check_branch
      %1150 = sbr.rel (0) target = $region25
    $region24: #{graph_encoder.1} parent=1 // pred_region
      _
    $region25: #{graph_encoder.1} parent=1 // pred_fallthru
      _
    // Predicated region
    $region26: #{graph_encoder.1} parent=1 // pred_check
      _
    $region27: #{graph_encoder.1} parent=1 // pred_check_branch
      %1152 = sbr.rel (0) target = $region29
    $region28: #{graph_encoder.1} parent=1 // pred_region
      _
    $region29: #{graph_encoder.1} parent=1 // pred_fallthru
      _
    %1153 = vsyncpa [#allocation3], 1

</llo_original>
